<compile_context>
chip_gen: v7x
topology: tpu7x:2x2x1
jax: 0.10.0
libtpu: 0.0.40
codegen_flags: <defaults>
</compile_context>

<pallas_src>
import jax
import jax.numpy as jnp
from jax.experimental import pallas as pl
from jax.experimental.pallas import tpu as pltpu

_TILE_B_MAX = 1024          # batch rows per grid step (multiple of 8)
_TILE_K_MAX = 2048          # feature columns per K step (multiple of 128)
_VMEM_LIMIT_BYTES = 40 * 1024 * 1024   # > v5e 16 MiB default, < v7x 64 MiB physical


def _round_up(x, m):
    return ((x + m - 1) // m) * m


def _cdiv(a, b):
    return -(-a // b)


def _choose_k_tiling(feature_dim):
    """Balanced K tiling.  Returns (tile_k, f_pad) with f_pad = n_k * tile_k >= F."""
    if feature_dim <= _TILE_K_MAX:
        return feature_dim, feature_dim            # single K block, no padding at all
    n_blocks = _cdiv(feature_dim, _TILE_K_MAX)
    tile_k = _round_up(_cdiv(feature_dim, n_blocks), 128)
    return tile_k, tile_k * n_blocks


def _choose_b_tile(batch):
    """Batch tile: multiple of 8 (or the full dim), >=2 tiles when B > 8 so the
    'parallel' axis can shard across both v7x TensorCores."""
    if batch <= 8:
        return batch
    return min(_TILE_B_MAX, _round_up(_cdiv(batch, 2), 8))


def prepare_softmax_regression_params(weight, bias):
    """One-time parameter prep (do NOT call per forward).

    weight: [num_classes, F] (f32), bias: [num_classes]
    Returns (w_t [f_pad, c_pad] bf16, b_p [1, c_pad] f32, num_classes).
    """
    num_classes, feat = weight.shape
    c_pad = max(128, _round_up(num_classes, 128))
    _, f_pad = _choose_k_tiling(feat)

    # bf16 streamed weight: halves weight HBM traffic, native MXU dtype.
    w_t = jnp.zeros((f_pad, c_pad), dtype=jnp.bfloat16)
    w_t = w_t.at[:feat, :num_classes].set(weight.T.astype(jnp.bfloat16))
    b_p = jnp.zeros((1, c_pad), dtype=jnp.float32)
    b_p = b_p.at[0, :num_classes].set(bias.astype(jnp.float32))
    return w_t, b_p, num_classes


def _make_linear_kernel(single_k):
    def kernel(x_ref, w_ref, b_ref, o_ref):
        # x_ref: [tb, tk], w_ref: [tk, c_pad] bf16, b_ref: [1, c_pad] f32
        # o_ref: [tb, c_pad] f32 (VMEM-resident across K steps -> accumulator)
        x = x_ref[...]
        if x.dtype != jnp.bfloat16:
            x = x.astype(jnp.bfloat16)             # bf16 MXU operands, f32 accumulate
        part = jnp.dot(x, w_ref[...], preferred_element_type=jnp.float32)

        if single_k:
            o_ref[...] = b_ref[...] + part         # fast path: no scratch, no pl.when
        else:
            k = pl.program_id(1)

            @pl.when(k == 0)
            def _init():
                o_ref[...] = b_ref[...] + part

            @pl.when(k > 0)
            def _accum():
                o_ref[...] += part

    return kernel


def softmax_regression_forward(features, w_t, b_p, num_classes):
    """features: [B, ...] (f32 or bf16); w_t/b_p from prepare_softmax_regression_params."""
    B = features.shape[0]
    x = features.reshape(B, -1)                    # == torch .view(B, -1)
    F = x.shape[1]
    f_pad, c_pad = w_t.shape

    tile_k, f_pad_expected = _choose_k_tiling(F)
    if f_pad != f_pad_expected:
        raise ValueError("weight was prepared for a different feature dimension")

    if f_pad != F:
        # Rare fallback (large F that is not a tile multiple): pad ONLY along F.
        x = jnp.pad(x, ((0, 0), (0, f_pad - F)))

    tile_b = _choose_b_tile(B)
    n_b = _cdiv(B, tile_b)                         # ragged edge block: masked output store
    n_k = f_pad // tile_k
    single_k = n_k == 1

    if single_k:
        grid = (n_b,)
        in_specs = [
            pl.BlockSpec((tile_b, tile_k), lambda i: (i, 0)),       # activations
            pl.BlockSpec((tile_k, c_pad), lambda i: (0, 0)),        # weight (resident)
            pl.BlockSpec((1, c_pad), lambda i: (0, 0)),             # bias (resident)
        ]
        out_specs = pl.BlockSpec((tile_b, c_pad), lambda i: (i, 0))
        dim_sem = ("parallel",)
    else:
        grid = (n_b, n_k)                          # K last (reduction axis)
        in_specs = [
            pl.BlockSpec((tile_b, tile_k), lambda i, k: (i, k)),
            pl.BlockSpec((tile_k, c_pad), lambda i, k: (k, 0)),
            pl.BlockSpec((1, c_pad), lambda i, k: (0, 0)),
        ]
        out_specs = pl.BlockSpec((tile_b, c_pad), lambda i, k: (i, 0))
        dim_sem = ("parallel", "arbitrary")

    # Realistic traffic: weight block is re-streamed once per batch tile.
    x_bytes = x.size * x.dtype.itemsize
    w_bytes = w_t.size * w_t.dtype.itemsize * n_b
    o_bytes = B * c_pad * 4
    cost = pl.CostEstimate(
        flops=2 * n_b * tile_b * f_pad * c_pad,
        transcendentals=0,
        bytes_accessed=x_bytes + w_bytes + o_bytes + c_pad * 4,
    )

    out_padded = pl.pallas_call(
        _make_linear_kernel(single_k),
        out_shape=jax.ShapeDtypeStruct((B, c_pad), jnp.float32),
        grid=grid,
        in_specs=in_specs,
        out_specs=out_specs,
        compiler_params=pltpu.CompilerParams(
            dimension_semantics=dim_sem,
            vmem_limit_bytes=_VMEM_LIMIT_BYTES,
        ),
        cost_estimate=cost,
    )(x, w_t, b_p)

    return out_padded[:, :num_classes]


if __name__ == "__main__":
    # Small shapes consistent with the module: features flattened per-sample.
    B, C, H, W = 8, 4, 16, 16                      # feature_dimension = 4*16*16 = 1024
    feature_dimension = C * H * W
    num_classes = 10

    key = jax.random.PRNGKey(0)
    k_x, k_w, k_b = jax.random.split(key, 3)

    features = jax.random.normal(k_x, (B, C, H, W), dtype=jnp.float32)
    # Deterministic parameter init (matches nn.Linear's uniform(-1/sqrt(F), 1/sqrt(F)) range).
    bound = 1.0 / (feature_dimension ** 0.5)
    weight = jax.random.uniform(k_w, (num_classes, feature_dimension),
                                minval=-bound, maxval=bound, dtype=jnp.float32)
    bias = jax.random.uniform(k_b, (num_classes,),
                              minval=-bound, maxval=bound, dtype=jnp.float32)

    # One-time parameter prep (hoisted out of the forward path).
    w_t, b_p, ncls = prepare_softmax_regression_params(weight, bias)

    fwd = jax.jit(softmax_regression_forward, static_argnums=(3,))
    out = fwd(features, w_t, b_p, ncls)
    out = jax.block_until_ready(out)
    assert out.shape == (B, num_classes)

    # Reference with the same bf16 rounding of the streamed operands, f32 accumulation.
    x2d = features.reshape(B, -1)
    x_bf = x2d.astype(jnp.bfloat16).astype(jnp.float32)
    w_bf = weight.astype(jnp.bfloat16).astype(jnp.float32)
    ref_bf16 = jnp.dot(x_bf, w_bf.T, precision=jax.lax.Precision.HIGHEST) + bias
    assert jnp.allclose(out, ref_bf16, atol=1e-4, rtol=1e-4)

    # Loose sanity check against the pure-f32 Linear (bf16 operand rounding error only).
    ref_f32 = x2d @ weight.T + bias
    assert jnp.allclose(out, ref_f32, atol=5e-2, rtol=5e-2)

    print("KERNEL_OK")
</pallas_src>

<mosaic_0001>
module attributes {stable_mosaic.version = 11 : i64} {
  func.func @kernel(%arg0: i32, %arg1: memref<8x1024xf32, #tpu.memory_space<vmem>>, %arg2: memref<1024x128xbf16, #tpu.memory_space<vmem>>, %arg3: memref<1x128xf32, #tpu.memory_space<vmem>>, %arg4: memref<8x128xf32, #tpu.memory_space<vmem>>) attributes {dimension_semantics = [#tpu.dimension_semantics<parallel>], iteration_bounds = array<i64: 1>, scalar_prefetch = 0 : i64, scratch_operands = 0 : i64, tpu.core_type = #tpu.core_type<tc>, window_params = [{transform_indices = @transform_0, window_bounds = array<i64: 8, 1024>}, {pipeline_mode = #tpu.pipeline_mode<synchronous>, transform_indices = @transform_1, window_bounds = array<i64: 1024, 128>}, {pipeline_mode = #tpu.pipeline_mode<synchronous>, transform_indices = @transform_2, window_bounds = array<i64: 1, 128>}, {transform_indices = @transform_3, window_bounds = array<i64: 8, 128>}]} {
    %c0 = arith.constant 0 : index
    %c0_0 = arith.constant 0 : index
    %0 = vector.load %arg1[%c0, %c0_0] : memref<8x1024xf32, #tpu.memory_space<vmem>>, vector<8x1024xf32>
    %1 = arith.truncf %0 : vector<8x1024xf32> to vector<8x1024xbf16>
    %c0_1 = arith.constant 0 : index
    %c0_2 = arith.constant 0 : index
    %2 = vector.load %arg2[%c0_1, %c0_2] : memref<1024x128xbf16, #tpu.memory_space<vmem>>, vector<1024x128xbf16>
    %cst = arith.constant dense<0.000000e+00> : vector<8x128xf32>
    %3 = tpu.matmul %1, %2, %cst {dimension_numbers = #tpu.dot_dimension_numbers<[1], [0], [0], [1], [0, 0, 1, 1], [], []>} : vector<8x1024xbf16>, vector<1024x128xbf16>, vector<8x128xf32> -> vector<8x128xf32>
    %c0_3 = arith.constant 0 : index
    %c0_4 = arith.constant 0 : index
    %4 = vector.load %arg3[%c0_3, %c0_4] : memref<1x128xf32, #tpu.memory_space<vmem>>, vector<1x128xf32>
    %5 = vector.broadcast %4 : vector<1x128xf32> to vector<8x128xf32>
    %6 = arith.addf %5, %3 : vector<8x128xf32>
    %c0_5 = arith.constant 0 : index
    %c0_6 = arith.constant 0 : index
    %7 = vector.load %arg4[%c0_5, %c0_6] : memref<8x128xf32, #tpu.memory_space<vmem>>, vector<8x128xf32>
    tpu.vector_store %arg4[%c0_5, %c0_6], %6 {strides = array<i32>} : memref<8x128xf32, #tpu.memory_space<vmem>>, vector<8x128xf32>,
    return
  }
  func.func @transform_0(%arg0: i32) -> (i32, i32) {
    %c0_i32 = arith.constant 0 : i32
    %c0_i32_0 = arith.constant 0 : i32
    return %arg0, %c0_i32 : i32, i32
  }
  func.func @transform_1(%arg0: i32) -> (i32, i32) {
    %c0_i32 = arith.constant 0 : i32
    %c0_i32_0 = arith.constant 0 : i32
    %c0_i32_1 = arith.constant 0 : i32
    return %c0_i32, %c0_i32_0 : i32, i32
  }
  func.func @transform_2(%arg0: i32) -> (i32, i32) {
    %c0_i32 = arith.constant 0 : i32
    %c0_i32_0 = arith.constant 0 : i32
    %c0_i32_1 = arith.constant 0 : i32
    return %c0_i32, %c0_i32_0 : i32, i32
  }
  func.func @transform_3(%arg0: i32) -> (i32, i32) {
    %c0_i32 = arith.constant 0 : i32
    %c0_i32_0 = arith.constant 0 : i32
    return %arg0, %c0_i32 : i32, i32
  }
}

</mosaic_0001>

<llo_original>
// kernel: softmax_regression_forward.1
$region0: #{softmax_regression_forward.1}
  #allocation0 [shape = 'u32[]', space=smem, size = 0x4, offset = 0x4, fixed_abs, tag = 'smem constant byte address 0x4 - core index']
  #allocation1 [shape = 'u32[144,128]{1,0:T(1,128)}', space=vmem, size = 0x12000, scoped, tag = 'internal scratch']
  %s0 = inlined_call_operand.vmem [shape: f32[8,1024], index: 0, kind: input, shape index: {}]
  %s1 = inlined_call_operand.vmem [shape: bf16[1024,128], index: 1, kind: input, shape index: {}]
  %s2 = inlined_call_operand.vmem [shape: f32[1,128], index: 2, kind: input, shape index: {}]
  %s3 = inlined_call_operand.hbm [shape: f32[8,128], index: 3, kind: output, shape index: {}]
  %s4 = sld [smem:[#allocation0]]
  $region22: #{softmax_regression_forward.1} parent=0
    _
  %s6 = ssub.s32 1, %s4
  %s7 = scalar_select 0, %s6, %s4
  $region1: #{softmax_regression_forward.1} parent=0
    #allocation2 [shape = 'u8[4096]{0}', space=vmem, size = 0x1000, scoped, tag = 'output window, operand 0, single buffered']
    #allocation3 [shape = 's32[1]{0}', space=sflag, size = 0x4, scoped, tag = 'scoped memory for softmax_regression_forward.1']
    %8 = vsyncpa [#allocation3], 0
    // Predicated region
    $region2: #{softmax_regression_forward.1} parent=1 // pred_check
      _
    $region3: #{softmax_regression_forward.1} parent=1 // pred_check_branch
      %10 = sbr.rel (0) target = $region5
    $region4: #{softmax_regression_forward.1} parent=1 // pred_region
      _
    $region5: #{softmax_regression_forward.1} parent=1 // pred_fallthru
      _
    // Predicated region
    $region6: #{softmax_regression_forward.1} parent=1 // pred_check
      _
    $region7: #{softmax_regression_forward.1} parent=1 // pred_check_branch
      %12 = sbr.rel (0) target = $region9
    $region8: #{softmax_regression_forward.1} parent=1 // pred_region
      _
    $region9: #{softmax_regression_forward.1} parent=1 // pred_fallthru
      _
    // Predicated region
    $region10: #{softmax_regression_forward.1} parent=1 // pred_check
      _
    $region11: #{softmax_regression_forward.1} parent=1 // pred_check_branch
      %14 = sbr.rel (0) target = $region13
    $region12: #{softmax_regression_forward.1} parent=1 // pred_region
      _
    $region13: #{softmax_regression_forward.1} parent=1 // pred_fallthru
      _
    %v16 = vld [vmem:[%s0] sm:$0xff]
    %v17 = vld [vmem:[%s0 + $0x8] sm:$0xff]
    %v18 = vld [vmem:[%s0 + $0x10] sm:$0xff]
    %v19 = vld [vmem:[%s0 + $0x18] sm:$0xff]
    %v20 = vld [vmem:[%s0 + $0x20] sm:$0xff]
    %v21 = vld [vmem:[%s0 + $0x28] sm:$0xff]
    %v22 = vld [vmem:[%s0 + $0x30] sm:$0xff]
    %v23 = vld [vmem:[%s0 + $0x38] sm:$0xff]
    %v24 = vpack.c.bf16 %v16, %v16
    %v25 = vpack.c.bf16 %v17, %v17
    %v26 = vpack.c.bf16 %v18, %v18
    %v27 = vpack.c.bf16 %v19, %v19
    %v28 = vpack.c.bf16 %v20, %v20
    %v29 = vpack.c.bf16 %v21, %v21
    %v30 = vpack.c.bf16 %v22, %v22
    %v31 = vpack.c.bf16 %v23, %v23
    %v32 = vld [vmem:[%s1] sm:$0xf]
    %v33 = vld [vmem:[%s1 + $0x4] sm:$0xf]
    %v34 = vld [vmem:[%s1 + $0x8] sm:$0xf]
    %v35 = vld [vmem:[%s1 + $0xc] sm:$0xf]
    %v36 = vld [vmem:[%s1 + $0x10] sm:$0xf]
    %v37 = vld [vmem:[%s1 + $0x14] sm:$0xf]
    %v38 = vld [vmem:[%s1 + $0x18] sm:$0xf]
    %v39 = vld [vmem:[%s1 + $0x1c] sm:$0xf]
    %v40 = vld [vmem:[%s1 + $0x20] sm:$0xf]
    %v41 = vld [vmem:[%s1 + $0x24] sm:$0xf]
    %v42 = vld [vmem:[%s1 + $0x28] sm:$0xf]
    %v43 = vld [vmem:[%s1 + $0x2c] sm:$0xf]
    %v44 = vld [vmem:[%s1 + $0x30] sm:$0xf]
    %v45 = vld [vmem:[%s1 + $0x34] sm:$0xf]
    %v46 = vld [vmem:[%s1 + $0x38] sm:$0xf]
    %v47 = vld [vmem:[%s1 + $0x3c] sm:$0xf]
    %v48 = vld [vmem:[%s1 + $0x40] sm:$0xf]
    %v49 = vld [vmem:[%s1 + $0x44] sm:$0xf]
    %v50 = vld [vmem:[%s1 + $0x48] sm:$0xf]
    %v51 = vld [vmem:[%s1 + $0x4c] sm:$0xf]
    %v52 = vld [vmem:[%s1 + $0x50] sm:$0xf]
    %v53 = vld [vmem:[%s1 + $0x54] sm:$0xf]
    %v54 = vld [vmem:[%s1 + $0x58] sm:$0xf]
    %v55 = vld [vmem:[%s1 + $0x5c] sm:$0xf]
    %v56 = vld [vmem:[%s1 + $0x60] sm:$0xf]
    %v57 = vld [vmem:[%s1 + $0x64] sm:$0xf]
    %v58 = vld [vmem:[%s1 + $0x68] sm:$0xf]
    %v59 = vld [vmem:[%s1 + $0x6c] sm:$0xf]
    %v60 = vld [vmem:[%s1 + $0x70] sm:$0xf]
    %v61 = vld [vmem:[%s1 + $0x74] sm:$0xf]
    %v62 = vld [vmem:[%s1 + $0x78] sm:$0xf]
    %v63 = vld [vmem:[%s1 + $0x7c] sm:$0xf]
    %v64 = vld [vmem:[%s1 + $0x80] sm:$0xf]
    %v65 = vld [vmem:[%s1 + $0x84] sm:$0xf]
    %v66 = vld [vmem:[%s1 + $0x88] sm:$0xf]
    %v67 = vld [vmem:[%s1 + $0x8c] sm:$0xf]
    %v68 = vld [vmem:[%s1 + $0x90] sm:$0xf]
    %v69 = vld [vmem:[%s1 + $0x94] sm:$0xf]
    %v70 = vld [vmem:[%s1 + $0x98] sm:$0xf]
    %v71 = vld [vmem:[%s1 + $0x9c] sm:$0xf]
    %v72 = vld [vmem:[%s1 + $0xa0] sm:$0xf]
    %v73 = vld [vmem:[%s1 + $0xa4] sm:$0xf]
    %v74 = vld [vmem:[%s1 + $0xa8] sm:$0xf]
    %v75 = vld [vmem:[%s1 + $0xac] sm:$0xf]
    %v76 = vld [vmem:[%s1 + $0xb0] sm:$0xf]
    %v77 = vld [vmem:[%s1 + $0xb4] sm:$0xf]
    %v78 = vld [vmem:[%s1 + $0xb8] sm:$0xf]
    %v79 = vld [vmem:[%s1 + $0xbc] sm:$0xf]
    %v80 = vld [vmem:[%s1 + $0xc0] sm:$0xf]
    %v81 = vld [vmem:[%s1 + $0xc4] sm:$0xf]
    %v82 = vld [vmem:[%s1 + $0xc8] sm:$0xf]
    %v83 = vld [vmem:[%s1 + $0xcc] sm:$0xf]
    %v84 = vld [vmem:[%s1 + $0xd0] sm:$0xf]
    %v85 = vld [vmem:[%s1 + $0xd4] sm:$0xf]
    %v86 = vld [vmem:[%s1 + $0xd8] sm:$0xf]
    %v87 = vld [vmem:[%s1 + $0xdc] sm:$0xf]
    %v88 = vld [vmem:[%s1 + $0xe0] sm:$0xf]
    %v89 = vld [vmem:[%s1 + $0xe4] sm:$0xf]
    %v90 = vld [vmem:[%s1 + $0xe8] sm:$0xf]
    %v91 = vld [vmem:[%s1 + $0xec] sm:$0xf]
    %v92 = vld [vmem:[%s1 + $0xf0] sm:$0xf]
    %v93 = vld [vmem:[%s1 + $0xf4] sm:$0xf]
    %v94 = vld [vmem:[%s1 + $0xf8] sm:$0xf]
    %v95 = vld [vmem:[%s1 + $0xfc] sm:$0xf]
    %v96 = vld [vmem:[%s1 + $0x100] sm:$0xf]
    %v97 = vld [vmem:[%s1 + $0x104] sm:$0xf]
    %v98 = vld [vmem:[%s1 + $0x108] sm:$0xf]
    %v99 = vld [vmem:[%s1 + $0x10c] sm:$0xf]
    %v100 = vld [vmem:[%s1 + $0x110] sm:$0xf]
    %v101 = vld [vmem:[%s1 + $0x114] sm:$0xf]
    %v102 = vld [vmem:[%s1 + $0x118] sm:$0xf]
    %v103 = vld [vmem:[%s1 + $0x11c] sm:$0xf]
    %v104 = vld [vmem:[%s1 + $0x120] sm:$0xf]
    %v105 = vld [vmem:[%s1 + $0x124] sm:$0xf]
    %v106 = vld [vmem:[%s1 + $0x128] sm:$0xf]
    %v107 = vld [vmem:[%s1 + $0x12c] sm:$0xf]
    %v108 = vld [vmem:[%s1 + $0x130] sm:$0xf]
    %v109 = vld [vmem:[%s1 + $0x134] sm:$0xf]
    %v110 = vld [vmem:[%s1 + $0x138] sm:$0xf]
    %v111 = vld [vmem:[%s1 + $0x13c] sm:$0xf]
    %v112 = vld [vmem:[%s1 + $0x140] sm:$0xf]
    %v113 = vld [vmem:[%s1 + $0x144] sm:$0xf]
    %v114 = vld [vmem:[%s1 + $0x148] sm:$0xf]
    %v115 = vld [vmem:[%s1 + $0x14c] sm:$0xf]
    %v116 = vld [vmem:[%s1 + $0x150] sm:$0xf]
    %v117 = vld [vmem:[%s1 + $0x154] sm:$0xf]
    %v118 = vld [vmem:[%s1 + $0x158] sm:$0xf]
    %v119 = vld [vmem:[%s1 + $0x15c] sm:$0xf]
    %v120 = vld [vmem:[%s1 + $0x160] sm:$0xf]
    %v121 = vld [vmem:[%s1 + $0x164] sm:$0xf]
    %v122 = vld [vmem:[%s1 + $0x168] sm:$0xf]
    %v123 = vld [vmem:[%s1 + $0x16c] sm:$0xf]
    %v124 = vld [vmem:[%s1 + $0x170] sm:$0xf]
    %v125 = vld [vmem:[%s1 + $0x174] sm:$0xf]
    %v126 = vld [vmem:[%s1 + $0x178] sm:$0xf]
    %v127 = vld [vmem:[%s1 + $0x17c] sm:$0xf]
    %v128 = vld [vmem:[%s1 + $0x180] sm:$0xf]
    %v129 = vld [vmem:[%s1 + $0x184] sm:$0xf]
    %v130 = vld [vmem:[%s1 + $0x188] sm:$0xf]
    %v131 = vld [vmem:[%s1 + $0x18c] sm:$0xf]
    %v132 = vld [vmem:[%s1 + $0x190] sm:$0xf]
    %v133 = vld [vmem:[%s1 + $0x194] sm:$0xf]
    %v134 = vld [vmem:[%s1 + $0x198] sm:$0xf]
    %v135 = vld [vmem:[%s1 + $0x19c] sm:$0xf]
    %v136 = vld [vmem:[%s1 + $0x1a0] sm:$0xf]
    %v137 = vld [vmem:[%s1 + $0x1a4] sm:$0xf]
    %v138 = vld [vmem:[%s1 + $0x1a8] sm:$0xf]
    %v139 = vld [vmem:[%s1 + $0x1ac] sm:$0xf]
    %v140 = vld [vmem:[%s1 + $0x1b0] sm:$0xf]
    %v141 = vld [vmem:[%s1 + $0x1b4] sm:$0xf]
    %v142 = vld [vmem:[%s1 + $0x1b8] sm:$0xf]
    %v143 = vld [vmem:[%s1 + $0x1bc] sm:$0xf]
    %v144 = vld [vmem:[%s1 + $0x1c0] sm:$0xf]
    %v145 = vld [vmem:[%s1 + $0x1c4] sm:$0xf]
    %v146 = vld [vmem:[%s1 + $0x1c8] sm:$0xf]
    %v147 = vld [vmem:[%s1 + $0x1cc] sm:$0xf]
    %v148 = vld [vmem:[%s1 + $0x1d0] sm:$0xf]
    %v149 = vld [vmem:[%s1 + $0x1d4] sm:$0xf]
    %v150 = vld [vmem:[%s1 + $0x1d8] sm:$0xf]
    %v151 = vld [vmem:[%s1 + $0x1dc] sm:$0xf]
    %v152 = vld [vmem:[%s1 + $0x1e0] sm:$0xf]
    %v153 = vld [vmem:[%s1 + $0x1e4] sm:$0xf]
    %v154 = vld [vmem:[%s1 + $0x1e8] sm:$0xf]
    %v155 = vld [vmem:[%s1 + $0x1ec] sm:$0xf]
    %v156 = vld [vmem:[%s1 + $0x1f0] sm:$0xf]
    %v157 = vld [vmem:[%s1 + $0x1f4] sm:$0xf]
    %v158 = vld [vmem:[%s1 + $0x1f8] sm:$0xf]
    %v159 = vld [vmem:[%s1 + $0x1fc] sm:$0xf]
    %v288 = vunpack.c.l.b16 %v32
    %v289 = vunpack.c.l.b16 %v33
    %v290 = vunpack.c.l.b16 %v34
    %v291 = vunpack.c.l.b16 %v35
    %v292 = vunpack.c.l.b16 %v36
    %v293 = vunpack.c.l.b16 %v37
    %v294 = vunpack.c.l.b16 %v38
    %v295 = vunpack.c.l.b16 %v39
    %v296 = vunpack.c.l.b16 %v40
    %v297 = vunpack.c.l.b16 %v41
    %v298 = vunpack.c.l.b16 %v42
    %v299 = vunpack.c.l.b16 %v43
    %v300 = vunpack.c.l.b16 %v44
    %v301 = vunpack.c.l.b16 %v45
    %v302 = vunpack.c.l.b16 %v46
    %v303 = vunpack.c.l.b16 %v47
    %v304 = vunpack.c.l.b16 %v48
    %v305 = vunpack.c.l.b16 %v49
    %v306 = vunpack.c.l.b16 %v50
    %v307 = vunpack.c.l.b16 %v51
    %v308 = vunpack.c.l.b16 %v52
    %v309 = vunpack.c.l.b16 %v53
    %v310 = vunpack.c.l.b16 %v54
    %v311 = vunpack.c.l.b16 %v55
    %v312 = vunpack.c.l.b16 %v56
    %v313 = vunpack.c.l.b16 %v57
    %v314 = vunpack.c.l.b16 %v58
    %v315 = vunpack.c.l.b16 %v59
    %v316 = vunpack.c.l.b16 %v60
    %v317 = vunpack.c.l.b16 %v61
    %v318 = vunpack.c.l.b16 %v62
    %v319 = vunpack.c.l.b16 %v63
    %v320 = vunpack.c.l.b16 %v64
    %v321 = vunpack.c.l.b16 %v65
    %v322 = vunpack.c.l.b16 %v66
    %v323 = vunpack.c.l.b16 %v67
    %v324 = vunpack.c.l.b16 %v68
    %v325 = vunpack.c.l.b16 %v69
    %v326 = vunpack.c.l.b16 %v70
    %v327 = vunpack.c.l.b16 %v71
    %v328 = vunpack.c.l.b16 %v72
    %v329 = vunpack.c.l.b16 %v73
    %v330 = vunpack.c.l.b16 %v74
    %v331 = vunpack.c.l.b16 %v75
    %v332 = vunpack.c.l.b16 %v76
    %v333 = vunpack.c.l.b16 %v77
    %v334 = vunpack.c.l.b16 %v78
    %v335 = vunpack.c.l.b16 %v79
    %v336 = vunpack.c.l.b16 %v80
    %v337 = vunpack.c.l.b16 %v81
    %v338 = vunpack.c.l.b16 %v82
    %v339 = vunpack.c.l.b16 %v83
    %v340 = vunpack.c.l.b16 %v84
    %v341 = vunpack.c.l.b16 %v85
    %v342 = vunpack.c.l.b16 %v86
    %v343 = vunpack.c.l.b16 %v87
    %v344 = vunpack.c.l.b16 %v88
    %v345 = vunpack.c.l.b16 %v89
    %v346 = vunpack.c.l.b16 %v90
    %v347 = vunpack.c.l.b16 %v91
    %v348 = vunpack.c.l.b16 %v92
    %v349 = vunpack.c.l.b16 %v93
    %v350 = vunpack.c.l.b16 %v94
    %v351 = vunpack.c.l.b16 %v95
    %v352 = vunpack.c.l.b16 %v96
    %v353 = vunpack.c.l.b16 %v97
    %v354 = vunpack.c.l.b16 %v98
    %v355 = vunpack.c.l.b16 %v99
    %v356 = vunpack.c.l.b16 %v100
    %v357 = vunpack.c.l.b16 %v101
    %v358 = vunpack.c.l.b16 %v102
    %v359 = vunpack.c.l.b16 %v103
    %v360 = vunpack.c.l.b16 %v104
    %v361 = vunpack.c.l.b16 %v105
    %v362 = vunpack.c.l.b16 %v106
    %v363 = vunpack.c.l.b16 %v107
    %v364 = vunpack.c.l.b16 %v108
    %v365 = vunpack.c.l.b16 %v109
    %v366 = vunpack.c.l.b16 %v110
    %v367 = vunpack.c.l.b16 %v111
    %v368 = vunpack.c.l.b16 %v112
    %v369 = vunpack.c.l.b16 %v113
    %v370 = vunpack.c.l.b16 %v114
    %v371 = vunpack.c.l.b16 %v115
    %v372 = vunpack.c.l.b16 %v116
    %v373 = vunpack.c.l.b16 %v117
    %v374 = vunpack.c.l.b16 %v118
    %v375 = vunpack.c.l.b16 %v119
    %v376 = vunpack.c.l.b16 %v120
    %v377 = vunpack.c.l.b16 %v121
    %v378 = vunpack.c.l.b16 %v122
    %v379 = vunpack.c.l.b16 %v123
    %v380 = vunpack.c.l.b16 %v124
    %v381 = vunpack.c.l.b16 %v125
    %v382 = vunpack.c.l.b16 %v126
    %v383 = vunpack.c.l.b16 %v127
    %v384 = vunpack.c.l.b16 %v128
    %v385 = vunpack.c.l.b16 %v129
    %v386 = vunpack.c.l.b16 %v130
    %v387 = vunpack.c.l.b16 %v131
    %v388 = vunpack.c.l.b16 %v132
    %v389 = vunpack.c.l.b16 %v133
    %v390 = vunpack.c.l.b16 %v134
    %v391 = vunpack.c.l.b16 %v135
    %v392 = vunpack.c.l.b16 %v136
    %v393 = vunpack.c.l.b16 %v137
    %v394 = vunpack.c.l.b16 %v138
    %v395 = vunpack.c.l.b16 %v139
    %v396 = vunpack.c.l.b16 %v140
    %v397 = vunpack.c.l.b16 %v141
    %v398 = vunpack.c.l.b16 %v142
    %v399 = vunpack.c.l.b16 %v143
    %v400 = vunpack.c.l.b16 %v144
    %v401 = vunpack.c.l.b16 %v145
    %v402 = vunpack.c.l.b16 %v146
    %v403 = vunpack.c.l.b16 %v147
    %v404 = vunpack.c.l.b16 %v148
    %v405 = vunpack.c.l.b16 %v149
    %v406 = vunpack.c.l.b16 %v150
    %v407 = vunpack.c.l.b16 %v151
    %v408 = vunpack.c.l.b16 %v152
    %v409 = vunpack.c.l.b16 %v153
    %v410 = vunpack.c.l.b16 %v154
    %v411 = vunpack.c.l.b16 %v155
    %v412 = vunpack.c.l.b16 %v156
    %v413 = vunpack.c.l.b16 %v157
    %v414 = vunpack.c.l.b16 %v158
    %v415 = vunpack.c.l.b16 %v159
    %v416 = vpack.c.b16 %v289, %v288
    %v417 = vpack.c.b16 %v291, %v290
    %v418 = vpack.c.b16 %v293, %v292
    %v419 = vpack.c.b16 %v295, %v294
    %v420 = vpack.c.b16 %v297, %v296
    %v421 = vpack.c.b16 %v299, %v298
    %v422 = vpack.c.b16 %v301, %v300
    %v423 = vpack.c.b16 %v303, %v302
    %v424 = vpack.c.b16 %v305, %v304
    %v425 = vpack.c.b16 %v307, %v306
    %v426 = vpack.c.b16 %v309, %v308
    %v427 = vpack.c.b16 %v311, %v310
    %v428 = vpack.c.b16 %v313, %v312
    %v429 = vpack.c.b16 %v315, %v314
    %v430 = vpack.c.b16 %v317, %v316
    %v431 = vpack.c.b16 %v319, %v318
    %v432 = vpack.c.b16 %v321, %v320
    %v433 = vpack.c.b16 %v323, %v322
    %v434 = vpack.c.b16 %v325, %v324
    %v435 = vpack.c.b16 %v327, %v326
    %v436 = vpack.c.b16 %v329, %v328
    %v437 = vpack.c.b16 %v331, %v330
    %v438 = vpack.c.b16 %v333, %v332
    %v439 = vpack.c.b16 %v335, %v334
    %v440 = vpack.c.b16 %v337, %v336
    %v441 = vpack.c.b16 %v339, %v338
    %v442 = vpack.c.b16 %v341, %v340
    %v443 = vpack.c.b16 %v343, %v342
    %v444 = vpack.c.b16 %v345, %v344
    %v445 = vpack.c.b16 %v347, %v346
    %v446 = vpack.c.b16 %v349, %v348
    %v447 = vpack.c.b16 %v351, %v350
    %v448 = vpack.c.b16 %v353, %v352
    %v449 = vpack.c.b16 %v355, %v354
    %v450 = vpack.c.b16 %v357, %v356
    %v451 = vpack.c.b16 %v359, %v358
    %v452 = vpack.c.b16 %v361, %v360
    %v453 = vpack.c.b16 %v363, %v362
    %v454 = vpack.c.b16 %v365, %v364
    %v455 = vpack.c.b16 %v367, %v366
    %v456 = vpack.c.b16 %v369, %v368
    %v457 = vpack.c.b16 %v371, %v370
    %v458 = vpack.c.b16 %v373, %v372
    %v459 = vpack.c.b16 %v375, %v374
    %v460 = vpack.c.b16 %v377, %v376
    %v461 = vpack.c.b16 %v379, %v378
    %v462 = vpack.c.b16 %v381, %v380
    %v463 = vpack.c.b16 %v383, %v382
    %v464 = vpack.c.b16 %v385, %v384
    %v465 = vpack.c.b16 %v387, %v386
    %v466 = vpack.c.b16 %v389, %v388
    %v467 = vpack.c.b16 %v391, %v390
    %v468 = vpack.c.b16 %v393, %v392
    %v469 = vpack.c.b16 %v395, %v394
    %v470 = vpack.c.b16 %v397, %v396
    %v471 = vpack.c.b16 %v399, %v398
    %v472 = vpack.c.b16 %v401, %v400
    %v473 = vpack.c.b16 %v403, %v402
    %v474 = vpack.c.b16 %v405, %v404
    %v475 = vpack.c.b16 %v407, %v406
    %v476 = vpack.c.b16 %v409, %v408
    %v477 = vpack.c.b16 %v411, %v410
    %v478 = vpack.c.b16 %v413, %v412
    %v479 = vpack.c.b16 %v415, %v414
    %544 = vmatprep.subr.bf16.mxu0 0
    %545 = vmatpush1.bf16.msra.mxu0 %v416
    %546 = vmatprep.subr.bf16.mxu0 0
    %547 = vmatpush1.bf16.msra.mxu0 %v417
    %548 = vmatprep.subr.bf16.mxu0 0
    %549 = vmatpush1.bf16.msra.mxu0 %v418
    %550 = vmatprep.subr.bf16.mxu0 0
    %551 = vmatpush1.bf16.msra.mxu0 %v419
    %552 = vmatprep.subr.bf16.mxu0 0
    %553 = vmatpush1.bf16.msra.mxu0 %v420
    %554 = vmatprep.subr.bf16.mxu0 0
    %555 = vmatpush1.bf16.msra.mxu0 %v421
    %556 = vmatprep.subr.bf16.mxu0 0
    %557 = vmatpush1.bf16.msra.mxu0 %v422
    %558 = vmatprep.subr.bf16.mxu0 0
    %559 = vmatpush1.bf16.msra.mxu0 %v423
    %560 = vmatprep.subr.bf16.mxu0 0
    %561 = vmatpush1.bf16.msra.mxu0 %v424
    %562 = vmatprep.subr.bf16.mxu0 0
    %563 = vmatpush1.bf16.msra.mxu0 %v425
    %564 = vmatprep.subr.bf16.mxu0 0
    %565 = vmatpush1.bf16.msra.mxu0 %v426
    %566 = vmatprep.subr.bf16.mxu0 0
    %567 = vmatpush1.bf16.msra.mxu0 %v427
    %568 = vmatprep.subr.bf16.mxu0 0
    %569 = vmatpush1.bf16.msra.mxu0 %v428
    %570 = vmatprep.subr.bf16.mxu0 0
    %571 = vmatpush1.bf16.msra.mxu0 %v429
    %572 = vmatprep.subr.bf16.mxu0 0
    %573 = vmatpush1.bf16.msra.mxu0 %v430
    %574 = vmatprep.subr.bf16.mxu0 0
    %575 = vmatpush1.bf16.msra.mxu0 %v431
    %576 = vmatprep.mubr.bf16.mxu0 %v25
    %577 = vmatmul.mubr.bf16.gmra.mrb[0].mxu0 %v24
    %v578 = vpop.f32.mrb[0].mxu0
    %v579 = vadd.f32 0.0, %v578
    %v580 = vpop.f32.mrb[0].mxu0
    %v581 = vpop.f32.mrb[0].mxu0
    %v582 = vpop.f32.mrb[0].mxu0
    %583 = vdwg.mxu0
    %584 = vmatprep.subr.bf16.mxu0 0
    %585 = vmatpush1.bf16.msra.mxu0 %v432
    %586 = vmatprep.subr.bf16.mxu0 0
    %587 = vmatpush1.bf16.msra.mxu0 %v433
    %588 = vmatprep.subr.bf16.mxu0 0
    %589 = vmatpush1.bf16.msra.mxu0 %v434
    %590 = vmatprep.subr.bf16.mxu0 0
    %591 = vmatpush1.bf16.msra.mxu0 %v435
    %592 = vmatprep.subr.bf16.mxu0 0
    %593 = vmatpush1.bf16.msra.mxu0 %v436
    %594 = vmatprep.subr.bf16.mxu0 0
    %595 = vmatpush1.bf16.msra.mxu0 %v437
    %596 = vmatprep.subr.bf16.mxu0 0
    %597 = vmatpush1.bf16.msra.mxu0 %v438
    %598 = vmatprep.subr.bf16.mxu0 0
    %599 = vmatpush1.bf16.msra.mxu0 %v439
    %600 = vmatprep.subr.bf16.mxu0 0
    %601 = vmatpush1.bf16.msra.mxu0 %v440
    %602 = vmatprep.subr.bf16.mxu0 0
    %603 = vmatpush1.bf16.msra.mxu0 %v441
    %604 = vmatprep.subr.bf16.mxu0 0
    %605 = vmatpush1.bf16.msra.mxu0 %v442
    %606 = vmatprep.subr.bf16.mxu0 0
    %607 = vmatpush1.bf16.msra.mxu0 %v443
    %608 = vmatprep.subr.bf16.mxu0 0
    %609 = vmatpush1.bf16.msra.mxu0 %v444
    %610 = vmatprep.subr.bf16.mxu0 0
    %611 = vmatpush1.bf16.msra.mxu0 %v445
    %612 = vmatprep.subr.bf16.mxu0 0
    %613 = vmatpush1.bf16.msra.mxu0 %v446
    %614 = vmatprep.subr.bf16.mxu0 0
    %615 = vmatpush1.bf16.msra.mxu0 %v447
    %616 = vmatprep.mubr.bf16.mxu0 %v27
    %617 = vmatmul.mubr.bf16.gmra.mrb[0].mxu0 %v26
    %v618 = vpop.f32.mrb[0].mxu0
    %v619 = vadd.f32 %v579, %v618
    %v620 = vpop.f32.mrb[0].mxu0
    %v621 = vpop.f32.mrb[0].mxu0
    %v622 = vpop.f32.mrb[0].mxu0
    %623 = vdwg.mxu0
    %624 = vmatprep.subr.bf16.mxu0 0
    %625 = vmatpush1.bf16.msra.mxu0 %v448
    %626 = vmatprep.subr.bf16.mxu0 0
    %627 = vmatpush1.bf16.msra.mxu0 %v449
    %628 = vmatprep.subr.bf16.mxu0 0
    %629 = vmatpush1.bf16.msra.mxu0 %v450
    %630 = vmatprep.subr.bf16.mxu0 0
    %631 = vmatpush1.bf16.msra.mxu0 %v451
    %632 = vmatprep.subr.bf16.mxu0 0
    %633 = vmatpush1.bf16.msra.mxu0 %v452
    %634 = vmatprep.subr.bf16.mxu0 0
    %635 = vmatpush1.bf16.msra.mxu0 %v453
    %636 = vmatprep.subr.bf16.mxu0 0
    %637 = vmatpush1.bf16.msra.mxu0 %v454
    %638 = vmatprep.subr.bf16.mxu0 0
    %639 = vmatpush1.bf16.msra.mxu0 %v455
    %640 = vmatprep.subr.bf16.mxu0 0
    %641 = vmatpush1.bf16.msra.mxu0 %v456
    %642 = vmatprep.subr.bf16.mxu0 0
    %643 = vmatpush1.bf16.msra.mxu0 %v457
    %644 = vmatprep.subr.bf16.mxu0 0
    %645 = vmatpush1.bf16.msra.mxu0 %v458
    %646 = vmatprep.subr.bf16.mxu0 0
    %647 = vmatpush1.bf16.msra.mxu0 %v459
    %648 = vmatprep.subr.bf16.mxu0 0
    %649 = vmatpush1.bf16.msra.mxu0 %v460
    %650 = vmatprep.subr.bf16.mxu0 0
    %651 = vmatpush1.bf16.msra.mxu0 %v461
    %652 = vmatprep.subr.bf16.mxu0 0
    %653 = vmatpush1.bf16.msra.mxu0 %v462
    %654 = vmatprep.subr.bf16.mxu0 0
    %655 = vmatpush1.bf16.msra.mxu0 %v463
    %656 = vmatprep.mubr.bf16.mxu0 %v29
    %657 = vmatmul.mubr.bf16.gmra.mrb[0].mxu0 %v28
    %v658 = vpop.f32.mrb[0].mxu0
    %v659 = vadd.f32 %v619, %v658
    %v660 = vpop.f32.mrb[0].mxu0
    %v661 = vpop.f32.mrb[0].mxu0
    %v662 = vpop.f32.mrb[0].mxu0
    %663 = vdwg.mxu0
    %664 = vmatprep.subr.bf16.mxu0 0
    %665 = vmatpush1.bf16.msra.mxu0 %v464
    %666 = vmatprep.subr.bf16.mxu0 0
    %667 = vmatpush1.bf16.msra.mxu0 %v465
    %668 = vmatprep.subr.bf16.mxu0 0
    %669 = vmatpush1.bf16.msra.mxu0 %v466
    %670 = vmatprep.subr.bf16.mxu0 0
    %671 = vmatpush1.bf16.msra.mxu0 %v467
    %672 = vmatprep.subr.bf16.mxu0 0
    %673 = vmatpush1.bf16.msra.mxu0 %v468
    %674 = vmatprep.subr.bf16.mxu0 0
    %675 = vmatpush1.bf16.msra.mxu0 %v469
    %676 = vmatprep.subr.bf16.mxu0 0
    %677 = vmatpush1.bf16.msra.mxu0 %v470
    %678 = vmatprep.subr.bf16.mxu0 0
    %679 = vmatpush1.bf16.msra.mxu0 %v471
    %680 = vmatprep.subr.bf16.mxu0 0
    %681 = vmatpush1.bf16.msra.mxu0 %v472
    %682 = vmatprep.subr.bf16.mxu0 0
    %683 = vmatpush1.bf16.msra.mxu0 %v473
    %684 = vmatprep.subr.bf16.mxu0 0
    %685 = vmatpush1.bf16.msra.mxu0 %v474
    %686 = vmatprep.subr.bf16.mxu0 0
    %687 = vmatpush1.bf16.msra.mxu0 %v475
    %688 = vmatprep.subr.bf16.mxu0 0
    %689 = vmatpush1.bf16.msra.mxu0 %v476
    %690 = vmatprep.subr.bf16.mxu0 0
    %691 = vmatpush1.bf16.msra.mxu0 %v477
    %692 = vmatprep.subr.bf16.mxu0 0
    %693 = vmatpush1.bf16.msra.mxu0 %v478
    %694 = vmatprep.subr.bf16.mxu0 0
    %695 = vmatpush1.bf16.msra.mxu0 %v479
    %696 = vmatprep.mubr.bf16.mxu0 %v31
    %697 = vmatmul.mubr.bf16.gmra.mrb[0].mxu0 %v30
    %v698 = vpop.f32.mrb[0].mxu0
    %v699 = vadd.f32 %v659, %v698
    %v700 = vpop.f32.mrb[0].mxu0
    %v701 = vpop.f32.mrb[0].mxu0
    %v702 = vpop.f32.mrb[0].mxu0
    %703 = vdwg.mxu0
    %v704 = vld [vmem:[%s2] sm:$0x1]
    %v706 = vlaneseq
    %v707 = vshrl.u32 %v706, 7
    %v708 = vsub.s32 0, %v707
    %v709 = vrot.slane %v704, %v708
    %v711 = vadd.f32 %v709, %v699
    %712 = vst [vmem:[#allocation2] sm:$0xff] %v711
    // Predicated region
    $region14: #{softmax_regression_forward.1} parent=1 // pred_check
      _
    $region15: #{softmax_regression_forward.1} parent=1 // pred_check_branch
      %714 = sbr.rel (0) target = $region17
    $region16: #{softmax_regression_forward.1} parent=1 // pred_region
      %s716 = ssub.s32 128, 128
      %717 = vsyncadd [#allocation3], %s716
      %s719 = sshll.u32 [#allocation2], 4
      %s720 = int_to_ptr.vmem [resolvable:$true] %s719
      %722 = dma.vmem_to_hbm [thread:$0]  %s720, 128, %s3, [#allocation3]
    $region17: #{softmax_regression_forward.1} parent=1 // pred_fallthru
      _
    // Predicated region
    $region18: #{softmax_regression_forward.1} parent=1 // pred_check
      _
    $region19: #{softmax_regression_forward.1} parent=1 // pred_check_branch
      %724 = sbr.rel (0) target = $region21
    $region20: #{softmax_regression_forward.1} parent=1 // pred_region
      %725 = dma.done [#allocation3], 128
    $region21: #{softmax_regression_forward.1} parent=1 // pred_fallthru
      _
    %726 = vsyncpa [#allocation3], 1

</llo_original>
